<compile_context>
chip_gen: v7x
topology: tpu7x:2x2x1
jax: 0.10.0
libtpu: 0.0.40
codegen_flags: <defaults>
</compile_context>

<pallas_src>
import functools

import jax
import jax.numpy as jnp
from jax import lax
from jax.experimental import pallas as pl
from jax.experimental.pallas import tpu as pltpu

SIGMA = 1.0
MARGIN = 1.0
EPS = 1e-10


def _round_up(x, m):
    return (x + m - 1) // m * m


def _contrastive_kernel(
    num_items,        # static python int (closure)
    u_ref,            # (tb, Dp)  user embeddings, batch tile
    usq_ref,          # (tb, 1)   ||u||^2
    uid_ref,          # (tb, 1)   user row indices (-1 on padded rows)
    pid_ref,          # (tb, 1)   positive item index per row (-1 on padded rows)
    it_ref,           # (tn, Dp)  item-table tile (streamed directly, no gather)
    isq_ref,          # (1, tn)   precomputed item squared norms for this tile
    ipos_ref,         # (Bp, Dp)  gathered positive-column item embeddings
    psq_ref,          # (1, Bp)   squared norms of positive columns
    puid_ref,         # (1, Bp)   user idx of positive columns (-1 on padding)
    piid_ref,         # (1, Bp)   item idx of positive columns (-1 on padding)
    out_ref,          # (tb, 1)   per-row weighted-mean-over-items loss
    num_acc,          # (tb, 1) f32 scratch
    den_acc,          # (tb, 1) f32 scratch
):
    j = pl.program_id(1)
    nj = pl.num_programs(1)
    tn = it_ref.shape[0]

    @pl.when(j == 0)
    def _():
        num_acc[...] = jnp.zeros_like(num_acc)
        den_acc[...] = jnp.zeros_like(den_acc)

    usq = usq_ref[...]
    uid = uid_ref[...]
    pid = pid_ref[...]

    # ---- "arange(num_items)" negatives: item table streamed tile by tile ----
    dot = lax.dot_general(
        u_ref[...], it_ref[...], (((1,), (1,)), ((), ())),
        preferred_element_type=jnp.float32,
    )                                                               # (tb, tn)
    # squared_distance/2 = 0.5*(||u||^2 + ||i||^2) - u.i  (clamped >= 0)
    sqd = jnp.maximum(0.5 * (usq + isq_ref[...]) - dot, 0.0)
    losses = jnp.maximum(MARGIN + SIGMA * sqd, 0.0)   # relu(margin - logits*sigma)

    col = j * tn + lax.broadcasted_iota(jnp.int32, (1, tn), 1)
    # F.pad(user_idx, ...) pads with zeros: the arange tail carries user id 0.
    hits = (uid == 0) | (pid == col)
    keep = jnp.logical_and(col < num_items, jnp.logical_not(hits))
    num_acc[...] += jnp.sum(jnp.where(keep, losses, 0.0), axis=-1, keepdims=True)
    den_acc[...] += jnp.sum(jnp.where(keep, 1.0, 0.0), axis=-1, keepdims=True)

    # ---- positive-column segment (indices[1, :]) + finalize, once per tile i --
    @pl.when(j == nj - 1)
    def _():
        dotp = lax.dot_general(
            u_ref[...], ipos_ref[...], (((1,), (1,)), ((), ())),
            preferred_element_type=jnp.float32,
        )                                                           # (tb, Bp)
        sqdp = jnp.maximum(0.5 * (usq + psq_ref[...]) - dotp, 0.0)
        lossesp = jnp.maximum(MARGIN + SIGMA * sqdp, 0.0)
        hitsp = (uid == puid_ref[...]) | (pid == piid_ref[...])
        # valid positive columns carry non-negative user indices; padding is -1
        keepp = jnp.logical_and(puid_ref[...] >= 0, jnp.logical_not(hitsp))
        num = num_acc[...] + jnp.sum(jnp.where(keepp, lossesp, 0.0),
                                     axis=-1, keepdims=True)
        den = den_acc[...] + jnp.sum(jnp.where(keepp, 1.0, 0.0),
                                     axis=-1, keepdims=True)
        out_ref[...] = num * pl.reciprocal(den + EPS, approx=True)


def embedding_contrastive_loss(user_embed, item_embed, target_indices, target_values,
                               *, tb_target=128, tn_target=512):
    """EmbeddingLoss.forward with loss == contrastive_loss.

    user_embed:     (num_users, D)
    item_embed:     (num_items, D)
    target_indices: (2, nnz) int32   COO indices of the sparse targets
    target_values:  (nnz,)   float   COO values of the sparse targets
    """
    num_items, d = item_embed.shape
    nnz = int(target_indices.shape[1])
    row_idx = target_indices[0, :].astype(jnp.int32)
    pos_idx = target_indices[1, :].astype(jnp.int32)

    # hardware-aligned padding / tile sizes (lane = 128, f32 sublane = 8)
    d_pad = _round_up(d, 128)
    tb = min(tb_target, _round_up(nnz, 8))
    b_pad = _round_up(nnz, tb)
    tn = min(tn_target, _round_up(num_items, 128))
    n_pad = _round_up(num_items, tn)

    f32 = jnp.float32

    # gathered user rows (one per target) + their squared norms
    u_g = jnp.pad(user_embed[row_idx, :], ((0, b_pad - nnz), (0, d_pad - d)))
    usq = jnp.sum(jnp.square(u_g.astype(f32)), axis=-1, keepdims=True)      # (Bp,1)

    # item table streamed directly (no identity-gather copy of the table)
    items = jnp.pad(item_embed, ((0, n_pad - num_items), (0, d_pad - d)))
    isq_full = jnp.sum(jnp.square(item_embed.astype(f32)), axis=-1)         # (N,)
    isq = jnp.pad(isq_full, (0, n_pad - num_items)).reshape(1, n_pad)

    # positive columns: the only genuinely gathered item rows
    ipos = jnp.pad(item_embed[pos_idx, :], ((0, b_pad - nnz), (0, d_pad - d)))
    psq = jnp.pad(isq_full[pos_idx], (0, b_pad - nnz)).reshape(1, b_pad)

    uid = jnp.pad(row_idx, (0, b_pad - nnz), constant_values=-1).reshape(b_pad, 1)
    pid = jnp.pad(pos_idx, (0, b_pad - nnz), constant_values=-1).reshape(b_pad, 1)
    puid = jnp.pad(row_idx, (0, b_pad - nnz), constant_values=-1).reshape(1, b_pad)
    piid = jnp.pad(pos_idx, (0, b_pad - nnz), constant_values=-1).reshape(1, b_pad)

    grid = (b_pad // tb, n_pad // tn)
    kernel = functools.partial(_contrastive_kernel, num_items)

    row_loss = pl.pallas_call(
        kernel,
        out_shape=jax.ShapeDtypeStruct((b_pad, 1), jnp.float32),
        grid_spec=pltpu.PrefetchScalarGridSpec(
            num_scalar_prefetch=0,
            grid=grid,
            in_specs=[
                pl.BlockSpec((tb, d_pad), lambda i, j: (i, 0)),      # u
                pl.BlockSpec((tb, 1), lambda i, j: (i, 0)),          # usq
                pl.BlockSpec((tb, 1), lambda i, j: (i, 0)),          # uid
                pl.BlockSpec((tb, 1), lambda i, j: (i, 0)),          # pid
                pl.BlockSpec((tn, d_pad), lambda i, j: (j, 0)),      # item tile
                pl.BlockSpec((1, tn), lambda i, j: (0, j)),          # item norms
                pl.BlockSpec((b_pad, d_pad), lambda i, j: (0, 0)),   # positives
                pl.BlockSpec((1, b_pad), lambda i, j: (0, 0)),       # pos norms
                pl.BlockSpec((1, b_pad), lambda i, j: (0, 0)),       # pos user idx
                pl.BlockSpec((1, b_pad), lambda i, j: (0, 0)),       # pos item idx
            ],
            out_specs=pl.BlockSpec((tb, 1), lambda i, j: (i, 0)),
            scratch_shapes=[pltpu.VMEM((tb, 1), jnp.float32),
                            pltpu.VMEM((tb, 1), jnp.float32)],
        ),
        compiler_params=pltpu.CompilerParams(
            dimension_semantics=("parallel", "arbitrary")),
    )(u_g, usq, uid, pid, items, isq, ipos, psq, puid, piid)

    # final weighted mean over the batch with |target values| (tiny; plain JAX)
    w = jnp.abs(target_values.astype(f32))
    return jnp.sum(row_loss[:nnz, 0] * w) / (jnp.sum(w) + EPS)


def _reference_loss(user_embed, item_embed, target_indices, target_values):
    """Pure-JAX mirror of the PyTorch code, for correctness checking."""
    num_items = item_embed.shape[0]
    row_idx = target_indices[0, :].astype(jnp.int32)
    col_idx = jnp.concatenate(
        [target_indices[1, :].astype(jnp.int32),
         jnp.arange(num_items, dtype=jnp.int32)])
    u = user_embed[row_idx, :].astype(jnp.float32)
    it = item_embed[col_idx, :].astype(jnp.float32)
    B, N = u.shape[0], it.shape[0]

    diff = u[:, None, :] - it[None, :, :]
    sqdist_half = jnp.sum(diff * diff, axis=-1) / 2.0
    logits = -sqdist_half
    losses = jnp.maximum(MARGIN - logits * SIGMA, 0.0)

    hits = row_idx[:, None] == jnp.pad(row_idx, (0, N - B))[None, :]
    hits = hits | (col_idx[:B, None] == col_idx[None, :])
    neg_mask = (~hits).astype(jnp.float32)

    denom = jnp.sum(neg_mask, axis=-1, keepdims=True) + EPS
    row_loss = jnp.sum(losses * neg_mask / denom, axis=-1)
    w = jnp.abs(target_values.astype(jnp.float32))
    return jnp.sum(row_loss * w / (jnp.sum(w) + EPS))


if __name__ == "__main__":
    key = jax.random.PRNGKey(0)
    k1, k2, k3, k4 = jax.random.split(key, 4)

    num_users, num_items, embed_dim, nnz = 6, 8, 16, 6

    user_embed = jax.random.normal(k1, (num_users, embed_dim), dtype=jnp.float32)
    item_embed = jax.random.normal(k2, (num_items, embed_dim), dtype=jnp.float32)

    # Sparse COO targets of logical shape (num_users, num_items).
    rows = jnp.arange(nnz, dtype=jnp.int32)
    cols = jax.random.randint(k3, (nnz,), 0, num_items, dtype=jnp.int32)
    target_indices = jnp.stack([rows, cols], axis=0)                  # (2, nnz)
    target_values = jax.random.uniform(k4, (nnz,), dtype=jnp.float32) + 0.5

    loss = embedding_contrastive_loss(user_embed, item_embed,
                                      target_indices, target_values)
    loss = jax.block_until_ready(loss)

    ref = _reference_loss(user_embed, item_embed, target_indices, target_values)
    # tolerance accounts for the approximate EUP reciprocal in the finalize
    assert jnp.allclose(loss, ref, rtol=5e-3, atol=1e-4), (loss, ref)

    print("KERNEL_OK")
</pallas_src>

<mosaic_0001>
module attributes {stable_mosaic.version = 11 : i64} {
  func.func @_contrastive_kernel(%arg0: i32, %arg1: i32, %arg2: memref<8x128xf32, #tpu.memory_space<vmem>>, %arg3: memref<8x1xf32, #tpu.memory_space<vmem>>, %arg4: memref<8x1xi32, #tpu.memory_space<vmem>>, %arg5: memref<8x1xi32, #tpu.memory_space<vmem>>, %arg6: memref<128x128xf32, #tpu.memory_space<vmem>>, %arg7: memref<1x128xf32, #tpu.memory_space<vmem>>, %arg8: memref<8x128xf32, #tpu.memory_space<vmem>>, %arg9: memref<1x8xf32, #tpu.memory_space<vmem>>, %arg10: memref<1x8xi32, #tpu.memory_space<vmem>>, %arg11: memref<1x8xi32, #tpu.memory_space<vmem>>, %arg12: memref<8x1xf32, #tpu.memory_space<vmem>>, %arg13: memref<8x1xf32, #tpu.memory_space<vmem>>, %arg14: memref<8x1xf32, #tpu.memory_space<vmem>>) attributes {dimension_semantics = [#tpu.dimension_semantics<parallel>, #tpu.dimension_semantics<arbitrary>], iteration_bounds = array<i64: 1, 1>, scalar_prefetch = 0 : i64, scratch_operands = 2 : i64, tpu.core_type = #tpu.core_type<tc>, window_params = [{transform_indices = @transform_0, window_bounds = array<i64: 8, 128>}, {transform_indices = @transform_1, window_bounds = array<i64: 8, 1>}, {transform_indices = @transform_2, window_bounds = array<i64: 8, 1>}, {transform_indices = @transform_3, window_bounds = array<i64: 8, 1>}, {transform_indices = @transform_4, window_bounds = array<i64: 128, 128>}, {transform_indices = @transform_5, window_bounds = array<i64: 1, 128>}, {pipeline_mode = #tpu.pipeline_mode<synchronous>, transform_indices = @transform_6, window_bounds = array<i64: 8, 128>}, {pipeline_mode = #tpu.pipeline_mode<synchronous>, transform_indices = @transform_7, window_bounds = array<i64: 1, 8>}, {pipeline_mode = #tpu.pipeline_mode<synchronous>, transform_indices = @transform_8, window_bounds = array<i64: 1, 8>}, {pipeline_mode = #tpu.pipeline_mode<synchronous>, transform_indices = @transform_9, window_bounds = array<i64: 1, 8>}, {transform_indices = @transform_10, window_bounds = array<i64: 8, 1>}]} {
    %c0_i32 = arith.constant 0 : i32
    %0 = arith.cmpi eq, %arg1, %c0_i32 : i32
    %1 = arith.extui %0 : i1 to i32
    %c0_i32_0 = arith.constant 0 : i32
    %2 = arith.cmpi ne, %1, %c0_i32_0 : i32
    scf.if %2 {
      %cst_34 = arith.constant 0.000000e+00 : f32
      %58 = vector.broadcast %cst_34 : f32 to vector<8x1xf32>
      %c0_35 = arith.constant 0 : index
      %c0_36 = arith.constant 0 : index
      %59 = vector.load %arg13[%c0_35, %c0_36] : memref<8x1xf32, #tpu.memory_space<vmem>>, vector<8x1xf32>
      tpu.vector_store %arg13[%c0_35, %c0_36], %58 {strides = array<i32>} : memref<8x1xf32, #tpu.memory_space<vmem>>, vector<8x1xf32>,
      %cst_37 = arith.constant 0.000000e+00 : f32
      %60 = vector.broadcast %cst_37 : f32 to vector<8x1xf32>
      %c0_38 = arith.constant 0 : index
      %c0_39 = arith.constant 0 : index
      %61 = vector.load %arg14[%c0_38, %c0_39] : memref<8x1xf32, #tpu.memory_space<vmem>>, vector<8x1xf32>
      tpu.vector_store %arg14[%c0_38, %c0_39], %60 {strides = array<i32>} : memref<8x1xf32, #tpu.memory_space<vmem>>, vector<8x1xf32>,
    } else {
    }
    %c0 = arith.constant 0 : index
    %c0_1 = arith.constant 0 : index
    %3 = vector.load %arg3[%c0, %c0_1] : memref<8x1xf32, #tpu.memory_space<vmem>>, vector<8x1xf32>
    %c0_2 = arith.constant 0 : index
    %c0_3 = arith.constant 0 : index
    %4 = vector.load %arg4[%c0_2, %c0_3] : memref<8x1xi32, #tpu.memory_space<vmem>>, vector<8x1xi32>
    %c0_4 = arith.constant 0 : index
    %c0_5 = arith.constant 0 : index
    %5 = vector.load %arg5[%c0_4, %c0_5] : memref<8x1xi32, #tpu.memory_space<vmem>>, vector<8x1xi32>
    %c0_6 = arith.constant 0 : index
    %c0_7 = arith.constant 0 : index
    %6 = vector.load %arg2[%c0_6, %c0_7] : memref<8x128xf32, #tpu.memory_space<vmem>>, vector<8x128xf32>
    %c0_8 = arith.constant 0 : index
    %c0_9 = arith.constant 0 : index
    %7 = vector.load %arg6[%c0_8, %c0_9] : memref<128x128xf32, #tpu.memory_space<vmem>>, vector<128x128xf32>
    %cst = arith.constant dense<0.000000e+00> : vector<8x128xf32>
    %8 = tpu.matmul %6, %7, %cst {dimension_numbers = #tpu.dot_dimension_numbers<[1], [1], [0], [0], [0, 0, 1, 0], [], []>} : vector<8x128xf32>, vector<128x128xf32>, vector<8x128xf32> -> vector<8x128xf32>
    %c0_10 = arith.constant 0 : index
    %c0_11 = arith.constant 0 : index
    %9 = vector.load %arg7[%c0_10, %c0_11] : memref<1x128xf32, #tpu.memory_space<vmem>>, vector<1x128xf32>
    %10 = vector.broadcast %3 : vector<8x1xf32> to vector<8x128xf32>
    %11 = vector.broadcast %9 : vector<1x128xf32> to vector<8x128xf32>
    %12 = arith.addf %10, %11 : vector<8x128xf32>
    %cst_12 = arith.constant 5.000000e-01 : f32
    %13 = vector.broadcast %cst_12 : f32 to vector<8x128xf32>
    %14 = arith.mulf %13, %12 : vector<8x128xf32>
    %15 = arith.subf %14, %8 : vector<8x128xf32>
    %cst_13 = arith.constant 0.000000e+00 : f32
    %16 = vector.broadcast %cst_13 : f32 to vector<8x128xf32>
    %17 = arith.maximumf %15, %16 : vector<8x128xf32>
    %cst_14 = arith.constant 1.000000e+00 : f32
    %18 = vector.broadcast %cst_14 : f32 to vector<8x128xf32>
    %19 = arith.mulf %18, %17 : vector<8x128xf32>
    %cst_15 = arith.constant 1.000000e+00 : f32
    %20 = vector.broadcast %cst_15 : f32 to vector<8x128xf32>
    %21 = arith.addf %20, %19 : vector<8x128xf32>
    %cst_16 = arith.constant 0.000000e+00 : f32
    %22 = vector.broadcast %cst_16 : f32 to vector<8x128xf32>
    %23 = arith.maximumf %21, %22 : vector<8x128xf32>
    %c128_i32 = arith.constant 128 : i32
    %24 = arith.muli %arg1, %c128_i32 : i32
    %25 = tpu.iota {dimensions = array<i32: 1>} : vector<1x128xi32>
    %26 = vector.broadcast %24 : i32 to vector<1x128xi32>
    %27 = arith.addi %26, %25 : vector<1x128xi32>
    %c0_i32_17 = arith.constant 0 : i32
    %28 = vector.broadcast %c0_i32_17 : i32 to vector<8x1xi32>
    %29 = arith.cmpi eq, %4, %28 : vector<8x1xi32>
    %30 = vector.broadcast %5 : vector<8x1xi32> to vector<8x128xi32>
    %31 = vector.broadcast %27 : vector<1x128xi32> to vector<8x128xi32>
    %32 = arith.cmpi eq, %30, %31 : vector<8x128xi32>
    %33 = vector.broadcast %29 : vector<8x1xi1> to vector<8x128xi1>
    %34 = arith.ori %33, %32 : vector<8x128xi1>
    %c8_i32 = arith.constant 8 : i32
    %35 = vector.broadcast %c8_i32 : i32 to vector<1x128xi32>
    %36 = arith.cmpi slt, %27, %35 : vector<1x128xi32>
    %cst_18 = arith.constant dense<true> : vector<8x128xi1>
    %37 = arith.xori %34, %cst_18 : vector<8x128xi1>
    %38 = vector.broadcast %36 : vector<1x128xi1> to vector<8x128xi1>
    %39 = arith.andi %38, %37 : vector<8x128xi1>
    %c0_19 = arith.constant 0 : index
    %c0_20 = arith.constant 0 : index
    %40 = vector.load %arg13[%c0_19, %c0_20] : memref<8x1xf32, #tpu.memory_space<vmem>>, vector<8x1xf32>
    %cst_21 = arith.constant 0.000000e+00 : f32
    %41 = vector.broadcast %cst_21 : f32 to vector<8x128xf32>
    %42 = arith.select %39, %23, %41 : vector<8x128xi1>, vector<8x128xf32>
    %cst_22 = arith.constant dense<0.000000e+00> : vector<8xf32>
    %43 = vector.multi_reduction <add>, %42, %cst_22 [1] : vector<8x128xf32> to vector<8xf32>
    %44 = vector.shape_cast %43 : vector<8xf32> to vector<8x1xf32>
    %45 = arith.addf %40, %44 : vector<8x1xf32>
    %c0_23 = arith.constant 0 : index
    %c0_24 = arith.constant 0 : index
    %46 = vector.load %arg13[%c0_23, %c0_24] : memref<8x1xf32, #tpu.memory_space<vmem>>, vector<8x1xf32>
    tpu.vector_store %arg13[%c0_23, %c0_24], %45 {strides = array<i32>} : memref<8x1xf32, #tpu.memory_space<vmem>>, vector<8x1xf32>,
    %c0_25 = arith.constant 0 : index
    %c0_26 = arith.constant 0 : index
    %47 = vector.load %arg14[%c0_25, %c0_26] : memref<8x1xf32, #tpu.memory_space<vmem>>, vector<8x1xf32>
    %cst_27 = arith.constant 1.000000e+00 : f32
    %cst_28 = arith.constant 0.000000e+00 : f32
    %48 = vector.broadcast %cst_27 : f32 to vector<8x128xf32>
    %49 = vector.broadcast %cst_28 : f32 to vector<8x128xf32>
    %50 = arith.select %39, %48, %49 : vector<8x128xi1>, vector<8x128xf32>
    %cst_29 = arith.constant dense<0.000000e+00> : vector<8xf32>
    %51 = vector.multi_reduction <add>, %50, %cst_29 [1] : vector<8x128xf32> to vector<8xf32>
    %52 = vector.shape_cast %51 : vector<8xf32> to vector<8x1xf32>
    %53 = arith.addf %47, %52 : vector<8x1xf32>
    %c0_30 = arith.constant 0 : index
    %c0_31 = arith.constant 0 : index
    %54 = vector.load %arg14[%c0_30, %c0_31] : memref<8x1xf32, #tpu.memory_space<vmem>>, vector<8x1xf32>
    tpu.vector_store %arg14[%c0_30, %c0_31], %53 {strides = array<i32>} : memref<8x1xf32, #tpu.memory_space<vmem>>, vector<8x1xf32>,
    %c0_i32_32 = arith.constant 0 : i32
    %55 = arith.cmpi eq, %arg1, %c0_i32_32 : i32
    %56 = arith.extui %55 : i1 to i32
    %c0_i32_33 = arith.constant 0 : i32
    %57 = arith.cmpi ne, %56, %c0_i32_33 : i32
    scf.if %57 {
      %c0_34 = arith.constant 0 : index
      %c0_35 = arith.constant 0 : index
      %58 = vector.load %arg2[%c0_34, %c0_35] : memref<8x128xf32, #tpu.memory_space<vmem>>, vector<8x128xf32>
      %c0_36 = arith.constant 0 : index
      %c0_37 = arith.constant 0 : index
      %59 = vector.load %arg8[%c0_36, %c0_37] : memref<8x128xf32, #tpu.memory_space<vmem>>, vector<8x128xf32>
      %cst_38 = arith.constant dense<0.000000e+00> : vector<8x8xf32>
      %60 = tpu.matmul %58, %59, %cst_38 {dimension_numbers = #tpu.dot_dimension_numbers<[1], [1], [0], [0], [0, 0, 1, 0], [], []>} : vector<8x128xf32>, vector<8x128xf32>, vector<8x8xf32> -> vector<8x8xf32>
      %c0_39 = arith.constant 0 : index
      %c0_40 = arith.constant 0 : index
      %61 = vector.load %arg9[%c0_39, %c0_40] : memref<1x8xf32, #tpu.memory_space<vmem>>, vector<1x8xf32>
      %62 = vector.broadcast %3 : vector<8x1xf32> to vector<8x8xf32>
      %63 = vector.broadcast %61 : vector<1x8xf32> to vector<8x8xf32>
      %64 = arith.addf %62, %63 : vector<8x8xf32>
      %cst_41 = arith.constant 5.000000e-01 : f32
      %65 = vector.broadcast %cst_41 : f32 to vector<8x8xf32>
      %66 = arith.mulf %65, %64 : vector<8x8xf32>
      %67 = arith.subf %66, %60 : vector<8x8xf32>
      %cst_42 = arith.constant 0.000000e+00 : f32
      %68 = vector.broadcast %cst_42 : f32 to vector<8x8xf32>
      %69 = arith.maximumf %67, %68 : vector<8x8xf32>
      %cst_43 = arith.constant 1.000000e+00 : f32
      %70 = vector.broadcast %cst_43 : f32 to vector<8x8xf32>
      %71 = arith.mulf %70, %69 : vector<8x8xf32>
      %cst_44 = arith.constant 1.000000e+00 : f32
      %72 = vector.broadcast %cst_44 : f32 to vector<8x8xf32>
      %73 = arith.addf %72, %71 : vector<8x8xf32>
      %cst_45 = arith.constant 0.000000e+00 : f32
      %74 = vector.broadcast %cst_45 : f32 to vector<8x8xf32>
      %75 = arith.maximumf %73, %74 : vector<8x8xf32>
      %c0_46 = arith.constant 0 : index
      %c0_47 = arith.constant 0 : index
      %76 = vector.load %arg10[%c0_46, %c0_47] : memref<1x8xi32, #tpu.memory_space<vmem>>, vector<1x8xi32>
      %77 = vector.broadcast %4 : vector<8x1xi32> to vector<8x8xi32>
      %78 = vector.broadcast %76 : vector<1x8xi32> to vector<8x8xi32>
      %79 = arith.cmpi eq, %77, %78 : vector<8x8xi32>
      %c0_48 = arith.constant 0 : index
      %c0_49 = arith.constant 0 : index
      %80 = vector.load %arg11[%c0_48, %c0_49] : memref<1x8xi32, #tpu.memory_space<vmem>>, vector<1x8xi32>
      %81 = vector.broadcast %5 : vector<8x1xi32> to vector<8x8xi32>
      %82 = vector.broadcast %80 : vector<1x8xi32> to vector<8x8xi32>
      %83 = arith.cmpi eq, %81, %82 : vector<8x8xi32>
      %84 = arith.ori %79, %83 : vector<8x8xi1>
      %c0_50 = arith.constant 0 : index
      %c0_51 = arith.constant 0 : index
      %85 = vector.load %arg10[%c0_50, %c0_51] : memref<1x8xi32, #tpu.memory_space<vmem>>, vector<1x8xi32>
      %c0_i32_52 = arith.constant 0 : i32
      %86 = vector.broadcast %c0_i32_52 : i32 to vector<1x8xi32>
      %87 = arith.cmpi sge, %85, %86 : vector<1x8xi32>
      %cst_53 = arith.constant dense<true> : vector<8x8xi1>
      %88 = arith.xori %84, %cst_53 : vector<8x8xi1>
      %89 = vector.broadcast %87 : vector<1x8xi1> to vector<8x8xi1>
      %90 = arith.andi %89, %88 : vector<8x8xi1>
      %c0_54 = arith.constant 0 : index
      %c0_55 = arith.constant 0 : index
      %91 = vector.load %arg13[%c0_54, %c0_55] : memref<8x1xf32, #tpu.memory_space<vmem>>, vector<8x1xf32>
      %cst_56 = arith.constant 0.000000e+00 : f32
      %92 = vector.broadcast %cst_56 : f32 to vector<8x8xf32>
      %93 = arith.select %90, %75, %92 : vector<8x8xi1>, vector<8x8xf32>
      %cst_57 = arith.constant dense<0.000000e+00> : vector<8xf32>
      %94 = vector.multi_reduction <add>, %93, %cst_57 [1] : vector<8x8xf32> to vector<8xf32>
      %95 = vector.shape_cast %94 : vector<8xf32> to vector<8x1xf32>
      %96 = arith.addf %91, %95 : vector<8x1xf32>
      %c0_58 = arith.constant 0 : index
      %c0_59 = arith.constant 0 : index
      %97 = vector.load %arg14[%c0_58, %c0_59] : memref<8x1xf32, #tpu.memory_space<vmem>>, vector<8x1xf32>
      %cst_60 = arith.constant 1.000000e+00 : f32
      %cst_61 = arith.constant 0.000000e+00 : f32
      %98 = vector.broadcast %cst_60 : f32 to vector<8x8xf32>
      %99 = vector.broadcast %cst_61 : f32 to vector<8x8xf32>
      %100 = arith.select %90, %98, %99 : vector<8x8xi1>, vector<8x8xf32>
      %cst_62 = arith.constant dense<0.000000e+00> : vector<8xf32>
      %101 = vector.multi_reduction <add>, %100, %cst_62 [1] : vector<8x8xf32> to vector<8xf32>
      %102 = vector.shape_cast %101 : vector<8xf32> to vector<8x1xf32>
      %103 = arith.addf %97, %102 : vector<8x1xf32>
      %cst_63 = arith.constant 1.000000e-10 : f32
      %104 = vector.broadcast %cst_63 : f32 to vector<8x1xf32>
      %105 = arith.addf %103, %104 : vector<8x1xf32>
      %106 = tpu.reciprocal %105 {approx = true} : vector<8x1xf32> -> vector<8x1xf32>
      %107 = arith.mulf %96, %106 : vector<8x1xf32>
      %c0_64 = arith.constant 0 : index
      %c0_65 = arith.constant 0 : index
      %108 = vector.load %arg12[%c0_64, %c0_65] : memref<8x1xf32, #tpu.memory_space<vmem>>, vector<8x1xf32>
      tpu.vector_store %arg12[%c0_64, %c0_65], %107 {strides = array<i32>} : memref<8x1xf32, #tpu.memory_space<vmem>>, vector<8x1xf32>,
    } else {
    }
    return
  }
  func.func @transform_0(%arg0: i32, %arg1: i32) -> (i32, i32) {
    %c0_i32 = arith.constant 0 : i32
    %c0_i32_0 = arith.constant 0 : i32
    return %arg0, %c0_i32 : i32, i32
  }
  func.func @transform_1(%arg0: i32, %arg1: i32) -> (i32, i32) {
    %c0_i32 = arith.constant 0 : i32
    %c0_i32_0 = arith.constant 0 : i32
    return %arg0, %c0_i32 : i32, i32
  }
  func.func @transform_2(%arg0: i32, %arg1: i32) -> (i32, i32) {
    %c0_i32 = arith.constant 0 : i32
    %c0_i32_0 = arith.constant 0 : i32
    return %arg0, %c0_i32 : i32, i32
  }
  func.func @transform_3(%arg0: i32, %arg1: i32) -> (i32, i32) {
    %c0_i32 = arith.constant 0 : i32
    %c0_i32_0 = arith.constant 0 : i32
    return %arg0, %c0_i32 : i32, i32
  }
  func.func @transform_4(%arg0: i32, %arg1: i32) -> (i32, i32) {
    %c0_i32 = arith.constant 0 : i32
    %c0_i32_0 = arith.constant 0 : i32
    return %arg1, %c0_i32 : i32, i32
  }
  func.func @transform_5(%arg0: i32, %arg1: i32) -> (i32, i32) {
    %c0_i32 = arith.constant 0 : i32
    %c0_i32_0 = arith.constant 0 : i32
    return %c0_i32, %arg1 : i32, i32
  }
  func.func @transform_6(%arg0: i32, %arg1: i32) -> (i32, i32) {
    %c0_i32 = arith.constant 0 : i32
    %c0_i32_0 = arith.constant 0 : i32
    %c0_i32_1 = arith.constant 0 : i32
    return %c0_i32, %c0_i32_0 : i32, i32
  }
  func.func @transform_7(%arg0: i32, %arg1: i32) -> (i32, i32) {
    %c0_i32 = arith.constant 0 : i32
    %c0_i32_0 = arith.constant 0 : i32
    %c0_i32_1 = arith.constant 0 : i32
    return %c0_i32, %c0_i32_0 : i32, i32
  }
  func.func @transform_8(%arg0: i32, %arg1: i32) -> (i32, i32) {
    %c0_i32 = arith.constant 0 : i32
    %c0_i32_0 = arith.constant 0 : i32
    %c0_i32_1 = arith.constant 0 : i32
    return %c0_i32, %c0_i32_0 : i32, i32
  }
  func.func @transform_9(%arg0: i32, %arg1: i32) -> (i32, i32) {
    %c0_i32 = arith.constant 0 : i32
    %c0_i32_0 = arith.constant 0 : i32
    %c0_i32_1 = arith.constant 0 : i32
    return %c0_i32, %c0_i32_0 : i32, i32
  }
  func.func @transform_10(%arg0: i32, %arg1: i32) -> (i32, i32) {
    %c0_i32 = arith.constant 0 : i32
    %c0_i32_0 = arith.constant 0 : i32
    return %arg0, %c0_i32 : i32, i32
  }
}

</mosaic_0001>

<llo_original>
// kernel: tpu_custom_call.1
$region0: #{tpu_custom_call.1}
  #allocation0 [shape = 'u32[]', space=smem, size = 0x4, offset = 0x4, fixed_abs, tag = 'smem constant byte address 0x4 - core index']
  #allocation1 [shape = 'u32[144,128]{1,0:T(1,128)}', space=vmem, size = 0x12000, scoped, tag = 'internal scratch']
  #allocation2 [shape = 'f32[8,1]{1,0:T(8,128)}', space=vmem, size = 0x1000, scoped, tag = 'scratch operand']
  #allocation3 [shape = 'f32[8,1]{1,0:T(8,128)}', space=vmem, size = 0x1000, scoped, tag = 'scratch operand']
  %s0 = inlined_call_operand.vmem [shape: f32[8,128], index: 0, kind: input, shape index: {}]
  %s1 = inlined_call_operand.vmem [shape: f32[8,1], index: 1, kind: input, shape index: {}]
  %s2 = inlined_call_operand.vmem [shape: s32[8,1], index: 2, kind: input, shape index: {}]
  %s3 = inlined_call_operand.vmem [shape: s32[8,1], index: 3, kind: input, shape index: {}]
  %s4 = inlined_call_operand.hbm [shape: f32[128,128], index: 4, kind: input, shape index: {}]
  %s5 = inlined_call_operand.vmem [shape: f32[1,128], index: 5, kind: input, shape index: {}]
  %s6 = inlined_call_operand.vmem [shape: f32[8,128], index: 6, kind: input, shape index: {}]
  %s7 = inlined_call_operand.vmem [shape: f32[1,8], index: 7, kind: input, shape index: {}]
  %s8 = inlined_call_operand.vmem [shape: s32[1,8], index: 8, kind: input, shape index: {}]
  %s9 = inlined_call_operand.vmem [shape: s32[1,8], index: 9, kind: input, shape index: {}]
  %s10 = inlined_call_operand.vmem [shape: f32[8,1], index: 10, kind: output, shape index: {}]
  %s11 = sld [smem:[#allocation0]]
  $region62: #{tpu_custom_call.1} parent=0
    _
  %s13 = ssub.s32 1, %s11
  %s14 = scalar_select 0, %s13, %s11
  $region1: #{tpu_custom_call.1} parent=0
    #allocation4 [shape = 'u8[65536]{0}', space=vmem, size = 0x10000, scoped, tag = 'input window, operand 4, single buffered']
    #allocation5 [shape = 's32[1]{0}', space=sflag, size = 0x4, scoped, tag = 'scoped memory for tpu_custom_call.1']
    %15 = vsyncpa [#allocation5], 0
    // Predicated region
    $region2: #{tpu_custom_call.1} parent=1 // pred_check
      _
    $region3: #{tpu_custom_call.1} parent=1 // pred_check_branch
      %17 = sbr.rel (0) target = $region5
    $region4: #{tpu_custom_call.1} parent=1 // pred_region
      _
    $region5: #{tpu_custom_call.1} parent=1 // pred_fallthru
      _
    // Predicated region
    $region6: #{tpu_custom_call.1} parent=1 // pred_check
      _
    $region7: #{tpu_custom_call.1} parent=1 // pred_check_branch
      %19 = sbr.rel (0) target = $region9
    $region8: #{tpu_custom_call.1} parent=1 // pred_region
      _
    $region9: #{tpu_custom_call.1} parent=1 // pred_fallthru
      _
    // Predicated region
    $region10: #{tpu_custom_call.1} parent=1 // pred_check
      _
    $region11: #{tpu_custom_call.1} parent=1 // pred_check_branch
      %21 = sbr.rel (0) target = $region13
    $region12: #{tpu_custom_call.1} parent=1 // pred_region
      _
    $region13: #{tpu_custom_call.1} parent=1 // pred_fallthru
      _
    // Predicated region
    $region14: #{tpu_custom_call.1} parent=1 // pred_check
      _
    $region15: #{tpu_custom_call.1} parent=1 // pred_check_branch
      %23 = sbr.rel (0) target = $region17
    $region16: #{tpu_custom_call.1} parent=1 // pred_region
      _
    $region17: #{tpu_custom_call.1} parent=1 // pred_fallthru
      _
    // Predicated region
    $region18: #{tpu_custom_call.1} parent=1 // pred_check
      _
    $region19: #{tpu_custom_call.1} parent=1 // pred_check_branch
      %25 = sbr.rel (0) target = $region21
    $region20: #{tpu_custom_call.1} parent=1 // pred_region
      %s27 = ssub.s32 2048, 2048
      %28 = vsyncadd [#allocation5], %s27
      %s29 = sshll.u32 [#allocation4], 4
      %s30 = int_to_ptr.vmem [resolvable:$true] %s29
      %35 = dma.hbm_to_vmem [thread:$0]  %s4, 2048, %s30, [#allocation5], 128, 128, 8
    $region21: #{tpu_custom_call.1} parent=1 // pred_fallthru
      _
    // Predicated region
    $region22: #{tpu_custom_call.1} parent=1 // pred_check
      _
    $region23: #{tpu_custom_call.1} parent=1 // pred_check_branch
      %37 = sbr.rel (0) target = $region25
    $region24: #{tpu_custom_call.1} parent=1 // pred_region
      _
    $region25: #{tpu_custom_call.1} parent=1 // pred_fallthru
      _
    // Predicated region
    $region26: #{tpu_custom_call.1} parent=1 // pred_check
      _
    $region27: #{tpu_custom_call.1} parent=1 // pred_check_branch
      %39 = sbr.rel (0) target = $region29
    $region28: #{tpu_custom_call.1} parent=1 // pred_region
      _
    $region29: #{tpu_custom_call.1} parent=1 // pred_fallthru
      _
    // Predicated region
    $region30: #{tpu_custom_call.1} parent=1 // pred_check
      _
    $region31: #{tpu_custom_call.1} parent=1 // pred_check_branch
      %41 = sbr.rel (0) target = $region33
    $region32: #{tpu_custom_call.1} parent=1 // pred_region
      _
    $region33: #{tpu_custom_call.1} parent=1 // pred_fallthru
      _
    // Predicated region
    $region34: #{tpu_custom_call.1} parent=1 // pred_check
      _
    $region35: #{tpu_custom_call.1} parent=1 // pred_check_branch
      %43 = sbr.rel (0) target = $region37
    $region36: #{tpu_custom_call.1} parent=1 // pred_region
      _
    $region37: #{tpu_custom_call.1} parent=1 // pred_fallthru
      _
    // Predicated region
    $region38: #{tpu_custom_call.1} parent=1 // pred_check
      _
    $region39: #{tpu_custom_call.1} parent=1 // pred_check_branch
      %45 = sbr.rel (0) target = $region41
    $region40: #{tpu_custom_call.1} parent=1 // pred_region
      _
    $region41: #{tpu_custom_call.1} parent=1 // pred_fallthru
      _
    // Predicated region
    $region42: #{tpu_custom_call.1} parent=1 // pred_check
      _
    $region43: #{tpu_custom_call.1} parent=1 // pred_check_branch
      %47 = sbr.rel (0) target = $region45
    $region44: #{tpu_custom_call.1} parent=1 // pred_region
      %48 = dma.done [#allocation5], 2048
    $region45: #{tpu_custom_call.1} parent=1 // pred_fallthru
      _
    %p49 = scmp.eq.s32.totalorder 0, 0
    // Predicated region
    $region46: #{tpu_custom_call.1} parent=1 // pred_check
      %p50 = pneg %p49
    $region47: #{tpu_custom_call.1} parent=1 // pred_check_branch
      %52 = sbr.rel (%p50) target = $region49
    $region48: #{tpu_custom_call.1} parent=1 // pred_region
      %vm53 = vcmask 7168
      %54 = vst.msk [vmem:[#allocation2] sm:$0xff] %vm53, 0.0
      %55 = vst.msk [vmem:[#allocation3] sm:$0xff] %vm53, 0.0
    $region49: #{tpu_custom_call.1} parent=1 // pred_fallthru
      _
    %v56 = vld [vmem:[%s1] sm:$0xff]
    %v57 = vld [vmem:[%s2] sm:$0xff]
    %v58 = vld [vmem:[%s3] sm:$0xff]
    %v59 = vld [vmem:[%s0] sm:$0xff]
    %v60 = vld [vmem:[#allocation4] sm:$0xff]
    %v61 = vld [vmem:[#allocation4 + $0x8] sm:$0xff]
    %v62 = vld [vmem:[#allocation4 + $0x10] sm:$0xff]
    %v63 = vld [vmem:[#allocation4 + $0x18] sm:$0xff]
    %v64 = vld [vmem:[#allocation4 + $0x20] sm:$0xff]
    %v65 = vld [vmem:[#allocation4 + $0x28] sm:$0xff]
    %v66 = vld [vmem:[#allocation4 + $0x30] sm:$0xff]
    %v67 = vld [vmem:[#allocation4 + $0x38] sm:$0xff]
    %v68 = vld [vmem:[#allocation4 + $0x40] sm:$0xff]
    %v69 = vld [vmem:[#allocation4 + $0x48] sm:$0xff]
    %v70 = vld [vmem:[#allocation4 + $0x50] sm:$0xff]
    %v71 = vld [vmem:[#allocation4 + $0x58] sm:$0xff]
    %v72 = vld [vmem:[#allocation4 + $0x60] sm:$0xff]
    %v73 = vld [vmem:[#allocation4 + $0x68] sm:$0xff]
    %v74 = vld [vmem:[#allocation4 + $0x70] sm:$0xff]
    %v75 = vld [vmem:[#allocation4 + $0x78] sm:$0xff]
    %76 = vmatprep.subr.mxu0 0.0
    %77 = vmatpush1.xpose.msra.mxu0 %v60
    %78 = vmatprep.subr.mxu0 0.0
    %79 = vmatpush1.xpose.msra.mxu0 %v61
    %80 = vmatprep.subr.mxu0 0.0
    %81 = vmatpush1.xpose.msra.mxu0 %v62
    %82 = vmatprep.subr.mxu0 0.0
    %83 = vmatpush1.xpose.msra.mxu0 %v63
    %84 = vmatprep.subr.mxu0 0.0
    %85 = vmatpush1.xpose.msra.mxu0 %v64
    %86 = vmatprep.subr.mxu0 0.0
    %87 = vmatpush1.xpose.msra.mxu0 %v65
    %88 = vmatprep.subr.mxu0 0.0
    %89 = vmatpush1.xpose.msra.mxu0 %v66
    %90 = vmatprep.subr.mxu0 0.0
    %91 = vmatpush1.xpose.msra.mxu0 %v67
    %92 = vmatprep.subr.mxu0 0.0
    %93 = vmatpush1.xpose.msra.mxu0 %v68
    %94 = vmatprep.subr.mxu0 0.0
    %95 = vmatpush1.xpose.msra.mxu0 %v69
    %96 = vmatprep.subr.mxu0 0.0
    %97 = vmatpush1.xpose.msra.mxu0 %v70
    %98 = vmatprep.subr.mxu0 0.0
    %99 = vmatpush1.xpose.msra.mxu0 %v71
    %100 = vmatprep.subr.mxu0 0.0
    %101 = vmatpush1.xpose.msra.mxu0 %v72
    %102 = vmatprep.subr.mxu0 0.0
    %103 = vmatpush1.xpose.msra.mxu0 %v73
    %104 = vmatprep.subr.mxu0 0.0
    %105 = vmatpush1.xpose.msra.mxu0 %v74
    %106 = vmatprep.subr.mxu0 0.0
    %107 = vmatpush1.xpose.msra.mxu0 %v75
    %108 = vmatprep.subr.mxu0 0.0
    %109 = vmatpush1.xpose.msra.mxu0 0.0
    %110 = vmatprep.subr.mxu0 0.0
    %111 = vmatpush1.xpose.msra.mxu0 0.0
    %112 = vmatprep.subr.mxu0 0.0
    %113 = vmatpush1.xpose.msra.mxu0 0.0
    %114 = vmatprep.subr.mxu0 0.0
    %115 = vmatpush1.xpose.msra.mxu0 0.0
    %116 = vmatprep.subr.mxu0 0.0
    %117 = vmatpush1.xpose.msra.mxu0 0.0
    %118 = vmatprep.subr.mxu0 0.0
    %119 = vmatpush1.xpose.msra.mxu0 0.0
    %120 = vmatprep.subr.mxu0 0.0
    %121 = vmatpush1.xpose.msra.mxu0 0.0
    %122 = vmatprep.subr.mxu0 0.0
    %123 = vmatpush1.xpose.msra.mxu0 0.0
    %124 = vmatprep.subr.mxu0 0.0
    %125 = vmatpush1.xpose.msra.mxu0 0.0
    %126 = vmatprep.subr.mxu0 0.0
    %127 = vmatpush1.xpose.msra.mxu0 0.0
    %128 = vmatprep.subr.mxu0 0.0
    %129 = vmatpush1.xpose.msra.mxu0 0.0
    %130 = vmatprep.subr.mxu0 0.0
    %131 = vmatpush1.xpose.msra.mxu0 0.0
    %132 = vmatprep.subr.mxu0 0.0
    %133 = vmatpush1.xpose.msra.mxu0 0.0
    %134 = vmatprep.subr.mxu0 0.0
    %135 = vmatpush1.xpose.msra.mxu0 0.0
    %136 = vmatprep.subr.mxu0 0.0
    %137 = vmatpush1.xpose.msra.mxu0 0.0
    %138 = vmatprep.subr.mxu0 0.0
    %139 = vmatpush1.xpose.msra.mxu0 0.0
    %140 = vmatprep.mubr.f32.mxu0 0.0
    %141 = vmatmul.mubr.f32.gmra.mrb[0].mxu0 %v59
    %v142 = vpop.f32.mrb[0].mxu0
    %v143 = vadd.f32 0.0, %v142
    %v144 = vpop.f32.mrb[0].mxu0
    %145 = vdwg.mxu0
    %v146 = vld [vmem:[%s5] sm:$0x1]
    %148 = vset.pattern.permute.xlu0 0
    %149 = vperm.xlu0 %148, %v56
    %v150 = vpop.permute.xlu0 %149
    %v153 = vlaneseq
    %v154 = vshrl.u32 %v153, 7
    %v155 = vsub.s32 0, %v154
    %v156 = vrot.slane %v146, %v155
    %v158 = vadd.f32 %v150, %v156
    %v159 = vmul.f32 %v158, 0.5
    %v160 = vsub.f32 %v159, %v143
    %v161 = vmax.f32 %v160, 0.0
    %v162 = vadd.f32 %v161, 1.0
    %v163 = vmax.f32 %v162, 0.0
    %s164 = smul.u32 0, 128
    %v165 = vlaneseq
    %v166 = vand.u32 %v165, 127
    %v167 = vstv %s164
    %v168 = vadd.s32 %v167, %v166
    %vm169 = vcmp.eq.s32.totalorder %v57, 0
    %170 = vset.pattern.permute.xlu0 0
    %171 = vperm.xlu0 %170, %v58
    %v172 = vpop.permute.xlu0 %171
    %vm173 = vcmp.eq.s32.totalorder %v172, %v168
    %v174 = vsel %vm169, 1, 0
    %175 = vset.pattern.permute.xlu0 0
    %176 = vperm.xlu0 %175, %v174
    %v177 = vpop.permute.xlu0 %176
    %vm178 = vcmp.eq.s32.totalorder %v177, 1
    %vm179 = vmor %vm178, %vm173
    %vm180 = vcmp.lt.s32.totalorder %v168, 8
    %vm181 = vmxor %vm179, 1
    %v182 = vsel %vm180, 1, 0
    %vm183 = vcmp.eq.s32.totalorder %v182, 1
    %vm184 = vmand %vm183, %vm181
    %v185 = vld [vmem:[#allocation2] sm:$0xff]
    %v186 = vsel %vm184, %v163, 0.0
    %187 = vadd.xlane.f32.xlu0 %v186
    %v188 = vpop.xlane.xlu0 %187
    %v189 = vadd.f32 %v185, %v188
    %vm190 = vcmask 7168
    %191 = vst.msk [vmem:[#allocation2] sm:$0xff] %vm190, %v189
    %v192 = vld [vmem:[#allocation3] sm:$0xff]
    %v193 = vsel %vm184, 1.0, 0.0
    %194 = vadd.xlane.f32.xlu0 %v193
    %v195 = vpop.xlane.xlu0 %194
    %v196 = vadd.f32 %v192, %v195
    %197 = vst.msk [vmem:[#allocation3] sm:$0xff] %vm190, %v196
    // Predicated region
    $region50: #{tpu_custom_call.1} parent=1 // pred_check
      %p198 = pneg %p49
    $region51: #{tpu_custom_call.1} parent=1 // pred_check_branch
      %200 = sbr.rel (%p198) target = $region53
    $region52: #{tpu_custom_call.1} parent=1 // pred_region
      %v201 = vld [vmem:[%s0] sm:$0xff]
      %v202 = vld [vmem:[%s6] sm:$0xff]
      %203 = vmatprep.subr.mxu0 0.0
      %204 = vmatpush1.xpose.msra.mxu0 %v202
      %205 = vmatprep.subr.mxu0 0.0
      %206 = vmatpush1.xpose.msra.mxu0 0.0
      %207 = vmatprep.subr.mxu0 0.0
      %208 = vmatpush1.xpose.msra.mxu0 0.0
      %209 = vmatprep.subr.mxu0 0.0
      %210 = vmatpush1.xpose.msra.mxu0 0.0
      %211 = vmatprep.subr.mxu0 0.0
      %212 = vmatpush1.xpose.msra.mxu0 0.0
      %213 = vmatprep.subr.mxu0 0.0
      %214 = vmatpush1.xpose.msra.mxu0 0.0
      %215 = vmatprep.subr.mxu0 0.0
      %216 = vmatpush1.xpose.msra.mxu0 0.0
      %217 = vmatprep.subr.mxu0 0.0
      %218 = vmatpush1.xpose.msra.mxu0 0.0
      %219 = vmatprep.subr.mxu0 0.0
      %220 = vmatpush1.xpose.msra.mxu0 0.0
      %221 = vmatprep.subr.mxu0 0.0
      %222 = vmatpush1.xpose.msra.mxu0 0.0
      %223 = vmatprep.subr.mxu0 0.0
      %224 = vmatpush1.xpose.msra.mxu0 0.0
      %225 = vmatprep.subr.mxu0 0.0
      %226 = vmatpush1.xpose.msra.mxu0 0.0
      %227 = vmatprep.subr.mxu0 0.0
      %228 = vmatpush1.xpose.msra.mxu0 0.0
      %229 = vmatprep.subr.mxu0 0.0
      %230 = vmatpush1.xpose.msra.mxu0 0.0
      %231 = vmatprep.subr.mxu0 0.0
      %232 = vmatpush1.xpose.msra.mxu0 0.0
      %233 = vmatprep.subr.mxu0 0.0
      %234 = vmatpush1.xpose.msra.mxu0 0.0
      %235 = vmatprep.subr.mxu0 0.0
      %236 = vmatpush1.xpose.msra.mxu0 0.0
      %237 = vmatprep.subr.mxu0 0.0
      %238 = vmatpush1.xpose.msra.mxu0 0.0
      %239 = vmatprep.subr.mxu0 0.0
      %240 = vmatpush1.xpose.msra.mxu0 0.0
      %241 = vmatprep.subr.mxu0 0.0
      %242 = vmatpush1.xpose.msra.mxu0 0.0
      %243 = vmatprep.subr.mxu0 0.0
      %244 = vmatpush1.xpose.msra.mxu0 0.0
      %245 = vmatprep.subr.mxu0 0.0
      %246 = vmatpush1.xpose.msra.mxu0 0.0
      %247 = vmatprep.subr.mxu0 0.0
      %248 = vmatpush1.xpose.msra.mxu0 0.0
      %249 = vmatprep.subr.mxu0 0.0
      %250 = vmatpush1.xpose.msra.mxu0 0.0
      %251 = vmatprep.subr.mxu0 0.0
      %252 = vmatpush1.xpose.msra.mxu0 0.0
      %253 = vmatprep.subr.mxu0 0.0
      %254 = vmatpush1.xpose.msra.mxu0 0.0
      %255 = vmatprep.subr.mxu0 0.0
      %256 = vmatpush1.xpose.msra.mxu0 0.0
      %257 = vmatprep.subr.mxu0 0.0
      %258 = vmatpush1.xpose.msra.mxu0 0.0
      %259 = vmatprep.subr.mxu0 0.0
      %260 = vmatpush1.xpose.msra.mxu0 0.0
      %261 = vmatprep.subr.mxu0 0.0
      %262 = vmatpush1.xpose.msra.mxu0 0.0
      %263 = vmatprep.subr.mxu0 0.0
      %264 = vmatpush1.xpose.msra.mxu0 0.0
      %265 = vmatprep.subr.mxu0 0.0
      %266 = vmatpush1.xpose.msra.mxu0 0.0
      %267 = vmatprep.mubr.f32.mxu0 0.0
      %268 = vmatmul.mubr.f32.gmra.mrb[0].mxu0 %v201
      %v269 = vpop.f32.mrb[0].mxu0
      %v270 = vadd.f32 0.0, %v269
      %v271 = vpop.f32.mrb[0].mxu0
      %272 = vdwg.mxu0
      %v273 = vld [vmem:[%s7] sm:$0x1]
      %v275 = vlaneseq
      %v276 = vshrl.u32 %v275, 7
      %v277 = vsub.s32 0, %v276
      %v278 = vrot.slane %v273, %v277
      %v280 = vadd.f32 %v150, %v278
      %v281 = vmul.f32 %v280, 0.5
      %v282 = vsub.f32 %v281, %v270
      %v283 = vmax.f32 %v282, 0.0
      %v284 = vadd.f32 %v283, 1.0
      %v285 = vmax.f32 %v284, 0.0
      %v286 = vld [vmem:[%s8] sm:$0x1]
      %287 = vset.pattern.permute.xlu0 0
      %288 = vperm.xlu0 %287, %v57
      %v289 = vpop.permute.xlu0 %288
      %v290 = vlaneseq
      %v291 = vshrl.u32 %v290, 7
      %v292 = vsub.s32 0, %v291
      %v293 = vrot.slane %v286, %v292
      %vm294 = vcmp.eq.s32.totalorder %v289, %v293
      %v295 = vld [vmem:[%s9] sm:$0x1]
      %v296 = vlaneseq
      %v297 = vshrl.u32 %v296, 7
      %v298 = vsub.s32 0, %v297
      %v299 = vrot.slane %v295, %v298
      %vm300 = vcmp.eq.s32.totalorder %v172, %v299
      %vm301 = vmor %vm294, %vm300
      %vm302 = vcmp.ge.s32.totalorder %v286, 0
      %vm303 = vmxor %vm301, 1
      %v304 = vsel %vm302, 1, 0
      %v305 = vlaneseq
      %v306 = vshrl.u32 %v305, 7
      %v307 = vsub.s32 0, %v306
      %v308 = vrot.slane %v304, %v307
      %vm309 = vcmp.eq.s32.totalorder %v308, 1
      %vm310 = vmand %vm309, %vm303
      %v311 = vld [vmem:[#allocation2] sm:$0xff]
      %v312 = vsel %vm310, %v285, 0.0
      %vm313 = vcmask 64512
      %v314 = vsel %vm313, %v312, 0.0
      %315 = vadd.xlane.f32.xlu0 %v314
      %v316 = vpop.xlane.xlu0 %315
      %v317 = vadd.f32 %v311, %v316
      %v318 = vld [vmem:[#allocation3] sm:$0xff]
      %v319 = vsel %vm310, 1.0, 0.0
      %v320 = vsel %vm313, %v319, 0.0
      %321 = vadd.xlane.f32.xlu0 %v320
      %v322 = vpop.xlane.xlu0 %321
      %v323 = vadd.f32 %v318, %v322
      %v324 = vadd.f32 %v323, 1e-10
      %v325 = vrcp.pop %v324
      %v326 = vmul.f32 %v317, %v325
      %327 = vst.msk [vmem:[%s10] sm:$0xff] %vm190, %v326
    $region53: #{tpu_custom_call.1} parent=1 // pred_fallthru
      _
    // Predicated region
    $region54: #{tpu_custom_call.1} parent=1 // pred_check
      _
    $region55: #{tpu_custom_call.1} parent=1 // pred_check_branch
      %329 = sbr.rel (0) target = $region57
    $region56: #{tpu_custom_call.1} parent=1 // pred_region
      _
    $region57: #{tpu_custom_call.1} parent=1 // pred_fallthru
      _
    // Predicated region
    $region58: #{tpu_custom_call.1} parent=1 // pred_check
      _
    $region59: #{tpu_custom_call.1} parent=1 // pred_check_branch
      %331 = sbr.rel (0) target = $region61
    $region60: #{tpu_custom_call.1} parent=1 // pred_region
      _
    $region61: #{tpu_custom_call.1} parent=1 // pred_fallthru
      _
    %332 = vsyncpa [#allocation5], 1

</llo_original>
